<compile_context>
chip_gen: v6e
topology: v6e:2x2x1
jax: 0.10.0
libtpu: 0.0.40
codegen_flags: <defaults>
</compile_context>

<pallas_src>
import functools

import jax
import jax.numpy as jnp
from jax.experimental import pallas as pl
from jax.experimental.pallas import tpu as pltpu


def _gradient_kernel(coef_ref, x_ref, o_ref, *, W, group, dense_flip):
    """coef_ref: (2, L) f32 boundary coefficients [col-edge; row-edge].
       x_ref / o_ref: (Cb, L) with each row one flattened (H, W) plane."""
    Cb, L = x_ref.shape
    x = x_ref[...].astype(jnp.float32)
    ccol = coef_ref[0:1, :]   # +1 at col 0, -1 at col W-1, 0 elsewhere
    crow = coef_ref[1:2, :]   # +1 at row 0, -1 at row H-1, 0 elsewhere

    # Column (W-axis) 3-tap sum with the 1-px reflection folded in as a
    # mul-add.  pltpu.roll follows jnp.roll semantics: roll(x, s)[k] = x[k-s].
    xm1 = pltpu.roll(x, shift=1, axis=1)        # x[k-1]
    xp1 = pltpu.roll(x, shift=L - 1, axis=1)    # x[k+1]
    colsum = (x + xm1 + xp1) + ccol * (xp1 - xm1)

    # Row (H-axis) 3-tap sum of the column sums; shift by one image row (W).
    cm1 = pltpu.roll(colsum, shift=W, axis=1)      # colsum[row-1]
    cp1 = pltpu.roll(colsum, shift=L - W, axis=1)  # colsum[row+1]
    s9 = (colsum + cm1 + cp1) + crow * (cp1 - cm1)

    # |grad_x| + |grad_y| with kernel_x == kernel_y == [1/8 ring, -1 center].
    g = (0.25 * jnp.abs(s9 - 9.0 * x)).astype(o_ref.dtype)

    # Channel reversal within the block: each `group`-sized run of rows is
    # reversed (group == min(Cb, C)); the block-level part of the reversal is
    # handled by the input index_map in the wrapper.
    perm = []
    for base in range(0, Cb, group):
        perm.extend(range(base + group - 1, base - 1, -1))

    if perm == list(range(Cb)):           # C == 1: nothing to flip
        o_ref[...] = g
    elif dense_flip:
        # One sublane permutation + a single lane-dense full-tile store.
        o_ref[...] = jnp.concatenate([g[i:i + 1, :] for i in perm], axis=0)
    else:
        # Compile-safety fallback only (slower masked stores).
        for r, i in enumerate(perm):
            o_ref[r:r + 1, :] = g[i:i + 1, :]


def _vmem_capacity_bytes():
    try:
        return int(pltpu.get_tpu_info().vmem_capacity_bytes)
    except Exception:
        return 64 << 20        # conservative: v7x per-TensorCore VMEM


def _pick_block_planes(P, C, L, budget_bytes):
    """Pick Cb planes per block.

    Validity: Cb | C (within-image channel blocks) or C | Cb and Cb | P
    (whole-image groups).  Prefer Cb % 8 == 0 (full f32 sublanes), then a
    grid of >= 2 steps (double-buffer / megacore), then the largest block
    under the VMEM-derived budget.  Capped at 64 planes to bound flip IR.
    """
    best, best_key = 1, None
    for cb in range(1, min(P, 64) + 1):
        if not ((C % cb == 0) or (cb % C == 0 and P % cb == 0)):
            continue
        if cb > 1 and cb * L * 4 > budget_bytes:
            continue
        key = (cb % 8 == 0, (P // cb) >= 2, cb)
        if best_key is None or key > best_key:
            best, best_key = cb, key
    return best


def _build_coef(H, W):
    """(2, L) float32: row 0 = column-edge coeffs, row 1 = row-edge coeffs."""
    L = H * W
    k = jnp.arange(L, dtype=jnp.int32)
    col = k % W
    ccol = jnp.where(col == 0, 1.0, 0.0) + jnp.where(col == W - 1, -1.0, 0.0)
    crow = jnp.where(k < W, 1.0, 0.0) + jnp.where(k >= L - W, -1.0, 0.0)
    return jnp.stack([ccol, crow], axis=0).astype(jnp.float32)


def _gradient_net_impl(x, *, dense_flip, block_planes=None):
    N, C, H, W = x.shape
    assert H >= 2 and W >= 2, "ReflectionPad2d(1) requires H, W >= 2"
    L = H * W
    P = N * C

    vmem_cap = _vmem_capacity_bytes()
    # ~4 MiB blocks on 128 MiB-VMEM chips (v5e/v6e), ~2 MiB on v7x (64 MiB).
    budget = max(1 << 20, min(4 << 20, vmem_cap // 32))

    Cb = block_planes if block_planes is not None else _pick_block_planes(
        P, C, L, budget)
    assert (C % Cb == 0) or (Cb % C == 0 and P % Cb == 0), (Cb, C, P)
    group = min(Cb, C)
    nblocks = P // Cb

    # Free reshape: collapse of contiguous row-major dims (no HBM copy).
    x3 = x.reshape(nblocks, Cb, L)
    coef = _build_coef(H, W)

    if Cb <= C:
        # Within-image channel blocks: block-level reversal in the index_map.
        cpb = C // Cb

        def in_map(b):
            n = b // cpb
            c = b % cpb
            return (n * cpb + (cpb - 1 - c), 0, 0)
    else:
        # Whole-image groups: block index unchanged, reversal fully in-kernel.
        def in_map(b):
            return (b, 0, 0)

    # VMEM accounting: double-buffered in + out blocks, resident coefficients,
    # and ~8 whole-block f32 temporaries (roll results, colsum, s9, flip).
    itemsize = jnp.dtype(x.dtype).itemsize
    blk_io = Cb * L * itemsize
    blk_f32 = Cb * L * 4
    vmem_needed = 4 * blk_io + 2 * 2 * L * 4 + 8 * blk_f32 + (1 << 20)
    vmem_limit = int(min(vmem_cap * 3 // 4, max(vmem_needed, 32 << 20)))

    kernel = functools.partial(_gradient_kernel, W=W, group=group,
                               dense_flip=dense_flip)
    out = pl.pallas_call(
        kernel,
        out_shape=jax.ShapeDtypeStruct((nblocks, Cb, L), x.dtype),
        grid=(nblocks,),
        in_specs=[
            pl.BlockSpec((2, L), lambda b: (0, 0)),        # resident coeffs
            pl.BlockSpec((None, Cb, L), in_map),           # plane block
        ],
        out_specs=pl.BlockSpec((None, Cb, L), lambda b: (b, 0, 0)),
        compiler_params=pltpu.CompilerParams(
            dimension_semantics=("parallel",),
            vmem_limit_bytes=vmem_limit),
    )(coef, x3)
    return out.reshape(N, C, H, W)


def gradient_net(x, block_planes=None):
    """Pallas implementation of Gradient_Net.forward.  x: (N, C, H, W)."""
    try:
        return jax.block_until_ready(
            _gradient_net_impl(x, dense_flip=True, block_planes=block_planes))
    except Exception:
        # Safety net: if the installed Mosaic cannot lower the sublane-axis
        # concatenate used for the dense channel flip, fall back to per-row
        # stores (correct, slower store path).
        return jax.block_until_ready(
            _gradient_net_impl(x, dense_flip=False, block_planes=block_planes))


def gradient_net_ref(x):
    """Pure-JAX reference mirroring the PyTorch module (explicit convs)."""
    N, C, H, W = x.shape
    kvals = jnp.array([[1 / 8, 1 / 8, 1 / 8],
                       [1 / 8, -1.0, 1 / 8],
                       [1 / 8, 1 / 8, 1 / 8]], jnp.float32)
    kernel_x = kvals            # module hard-codes kernel_y == kernel_x
    kernel_y = kvals
    xp = jnp.pad(x.astype(jnp.float32),
                 ((0, 0), (0, 0), (1, 1), (1, 1)), mode="reflect")
    gx = jnp.zeros((N, C, H, W), jnp.float32)
    gy = jnp.zeros((N, C, H, W), jnp.float32)
    for di in range(3):
        for dj in range(3):
            win = xp[:, :, di:di + H, dj:dj + W]
            gx = gx + kernel_x[di, dj] * win
            gy = gy + kernel_y[di, dj] * win
    g = jnp.abs(gx) + jnp.abs(gy)
    return g[:, ::-1, :, :]     # torch.cat((g, gradient), 1) prepends


if __name__ == "__main__":
    key = jax.random.PRNGKey(0)
    k1, k2 = jax.random.split(key)

    # Main test: matches the module's typical image-batch usage.
    N, C, H, W = 2, 4, 16, 16
    x = jax.random.normal(k1, (N, C, H, W), dtype=jnp.float32)
    out = jax.block_until_ready(gradient_net(x))
    ref = gradient_net_ref(x)
    assert out.shape == (N, C, H, W), out.shape
    assert out.dtype == x.dtype
    assert jnp.allclose(out, ref, atol=1e-5, rtol=1e-5), "mismatch vs reference"

    # Secondary test: forces Cb < C so the block-level (index_map) reversal
    # path is also exercised.
    x2 = jax.random.normal(k2, (1, 4, 8, 8), dtype=jnp.float32)
    out2 = jax.block_until_ready(gradient_net(x2, block_planes=2))
    assert jnp.allclose(out2, gradient_net_ref(x2), atol=1e-5, rtol=1e-5), \
        "mismatch vs reference (blocked-channel path)"

    print("KERNEL_OK")
</pallas_src>

<mosaic_0001>
module attributes {stable_mosaic.version = 11 : i64} {
  func.func @_gradient_kernel(%arg0: i32, %arg1: memref<2x256xf32, #tpu.memory_space<vmem>>, %arg2: memref<1x8x256xf32, #tpu.memory_space<vmem>>, %arg3: memref<1x8x256xf32, #tpu.memory_space<vmem>>) attributes {dimension_semantics = [#tpu.dimension_semantics<parallel>], iteration_bounds = array<i64: 1>, scalar_prefetch = 0 : i64, scratch_operands = 0 : i64, tpu.core_type = #tpu.core_type<tc>, window_params = [{pipeline_mode = #tpu.pipeline_mode<synchronous>, transform_indices = @transform_0, window_bounds = array<i64: 2, 256>}, {transform_indices = @transform_1, window_bounds = array<i64: 1, 8, 256>}, {transform_indices = @transform_2, window_bounds = array<i64: 1, 8, 256>}]} {
    %c0 = arith.constant 0 : index
    %c0_0 = arith.constant 0 : index
    %c0_1 = arith.constant 0 : index
    %0 = vector.load %arg2[%c0, %c0_0, %c0_1] : memref<1x8x256xf32, #tpu.memory_space<vmem>>, vector<1x8x256xf32>
    %1 = vector.shape_cast %0 : vector<1x8x256xf32> to vector<8x256xf32>
    %c0_2 = arith.constant 0 : index
    %c0_3 = arith.constant 0 : index
    %2 = vector.load %arg1[%c0_2, %c0_3] : memref<2x256xf32, #tpu.memory_space<vmem>>, vector<1x256xf32>
    %c1 = arith.constant 1 : index
    %c0_4 = arith.constant 0 : index
    %3 = vector.load %arg1[%c1, %c0_4] : memref<2x256xf32, #tpu.memory_space<vmem>>, vector<1x256xf32>
    %c1_i32 = arith.constant 1 : i32
    %4 = tpu.dynamic_rotate %1 by %c1_i32 dim 1 : vector<8x256xf32>, i32 -> vector<8x256xf32>
    %c255_i32 = arith.constant 255 : i32
    %5 = tpu.dynamic_rotate %1 by %c255_i32 dim 1 : vector<8x256xf32>, i32 -> vector<8x256xf32>
    %6 = arith.addf %1, %4 : vector<8x256xf32>
    %7 = arith.addf %6, %5 : vector<8x256xf32>
    %8 = arith.subf %5, %4 : vector<8x256xf32>
    %9 = vector.broadcast %2 : vector<1x256xf32> to vector<8x256xf32>
    %10 = arith.mulf %9, %8 : vector<8x256xf32>
    %11 = arith.addf %7, %10 : vector<8x256xf32>
    %c16_i32 = arith.constant 16 : i32
    %12 = tpu.dynamic_rotate %11 by %c16_i32 dim 1 : vector<8x256xf32>, i32 -> vector<8x256xf32>
    %c240_i32 = arith.constant 240 : i32
    %13 = tpu.dynamic_rotate %11 by %c240_i32 dim 1 : vector<8x256xf32>, i32 -> vector<8x256xf32>
    %14 = arith.addf %11, %12 : vector<8x256xf32>
    %15 = arith.addf %14, %13 : vector<8x256xf32>
    %16 = arith.subf %13, %12 : vector<8x256xf32>
    %17 = vector.broadcast %3 : vector<1x256xf32> to vector<8x256xf32>
    %18 = arith.mulf %17, %16 : vector<8x256xf32>
    %19 = arith.addf %15, %18 : vector<8x256xf32>
    %cst = arith.constant 9.000000e+00 : f32
    %20 = vector.broadcast %cst : f32 to vector<8x256xf32>
    %21 = arith.mulf %20, %1 : vector<8x256xf32>
    %22 = arith.subf %19, %21 : vector<8x256xf32>
    %23 = math.absf %22 : vector<8x256xf32>
    %cst_5 = arith.constant 2.500000e-01 : f32
    %24 = vector.broadcast %cst_5 : f32 to vector<8x256xf32>
    %25 = arith.mulf %24, %23 : vector<8x256xf32>
    %26 = vector.extract_strided_slice %25 {offsets = [3, 0], sizes = [1, 256], strides = [1, 1]} : vector<8x256xf32> to vector<1x256xf32>
    %27 = vector.extract_strided_slice %25 {offsets = [2, 0], sizes = [1, 256], strides = [1, 1]} : vector<8x256xf32> to vector<1x256xf32>
    %28 = vector.extract_strided_slice %25 {offsets = [1, 0], sizes = [1, 256], strides = [1, 1]} : vector<8x256xf32> to vector<1x256xf32>
    %29 = vector.extract_strided_slice %25 {offsets = [0, 0], sizes = [1, 256], strides = [1, 1]} : vector<8x256xf32> to vector<1x256xf32>
    %30 = vector.extract_strided_slice %25 {offsets = [7, 0], sizes = [1, 256], strides = [1, 1]} : vector<8x256xf32> to vector<1x256xf32>
    %31 = vector.extract_strided_slice %25 {offsets = [6, 0], sizes = [1, 256], strides = [1, 1]} : vector<8x256xf32> to vector<1x256xf32>
    %32 = vector.extract_strided_slice %25 {offsets = [5, 0], sizes = [1, 256], strides = [1, 1]} : vector<8x256xf32> to vector<1x256xf32>
    %33 = vector.extract_strided_slice %25 {offsets = [4, 0], sizes = [1, 256], strides = [1, 1]} : vector<8x256xf32> to vector<1x256xf32>
    %34 = tpu.concatenate %26, %27, %28, %29, %30, %31, %32, %33 in 0 : vector<1x256xf32>, vector<1x256xf32>, vector<1x256xf32>, vector<1x256xf32>, vector<1x256xf32>, vector<1x256xf32>, vector<1x256xf32>, vector<1x256xf32> -> vector<8x256xf32>
    %c0_6 = arith.constant 0 : index
    %c0_7 = arith.constant 0 : index
    %c0_8 = arith.constant 0 : index
    %35 = vector.load %arg3[%c0_6, %c0_7, %c0_8] : memref<1x8x256xf32, #tpu.memory_space<vmem>>, vector<1x8x256xf32>
    %36 = vector.shape_cast %35 : vector<1x8x256xf32> to vector<8x256xf32>
    %37 = vector.shape_cast %34 : vector<8x256xf32> to vector<1x8x256xf32>
    tpu.vector_store %arg3[%c0_6, %c0_7, %c0_8], %37 {strides = array<i32>} : memref<1x8x256xf32, #tpu.memory_space<vmem>>, vector<1x8x256xf32>,
    return
  }
  func.func @transform_0(%arg0: i32) -> (i32, i32) {
    %c0_i32 = arith.constant 0 : i32
    %c0_i32_0 = arith.constant 0 : i32
    %c0_i32_1 = arith.constant 0 : i32
    return %c0_i32, %c0_i32_0 : i32, i32
  }
  func.func @transform_1(%arg0: i32) -> (i32, i32, i32) {
    %c0_i32 = arith.constant 0 : i32
    %c0_i32_0 = arith.constant 0 : i32
    %c0_i32_1 = arith.constant 0 : i32
    return %arg0, %c0_i32, %c0_i32_0 : i32, i32, i32
  }
  func.func @transform_2(%arg0: i32) -> (i32, i32, i32) {
    %c0_i32 = arith.constant 0 : i32
    %c0_i32_0 = arith.constant 0 : i32
    %c0_i32_1 = arith.constant 0 : i32
    return %arg0, %c0_i32, %c0_i32_0 : i32, i32, i32
  }
}

module attributes {stable_mosaic.version = 11 : i64} {
  func.func @_gradient_kernel(%arg0: i32, %arg1: memref<2x256xf32, #tpu.memory_space<vmem>>, %arg2: memref<1x8x256xf32, #tpu.memory_space<vmem>>, %arg3: memref<1x8x256xf32, #tpu.memory_space<vmem>>) attributes {dimension_semantics = [#tpu.dimension_semantics<parallel>], iteration_bounds = array<i64: 1>, scalar_prefetch = 0 : i64, scratch_operands = 0 : i64, tpu.core_type = #tpu.core_type<tc>, window_params = [{pipeline_mode = #tpu.pipeline_mode<synchronous>, transform_indices = @transform_0, window_bounds = array<i64: 2, 256>}, {transform_indices = @transform_1, window_bounds = array<i64: 1, 8, 256>}, {transform_indices = @transform_2, window_bounds = array<i64: 1, 8, 256>}]} {
    %c0 = arith.constant 0 : index
    %c0_0 = arith.constant 0 : index
    %c0_1 = arith.constant 0 : index
    %0 = vector.load %arg2[%c0, %c0_0, %c0_1] : memref<1x8x256xf32, #tpu.memory_space<vmem>>, vector<1x8x256xf32>
    %1 = vector.shape_cast %0 : vector<1x8x256xf32> to vector<8x256xf32>
    %c0_2 = arith.constant 0 : index
    %c0_3 = arith.constant 0 : index
    %2 = vector.load %arg1[%c0_2, %c0_3] : memref<2x256xf32, #tpu.memory_space<vmem>>, vector<1x256xf32>
    %c1 = arith.constant 1 : index
    %c0_4 = arith.constant 0 : index
    %3 = vector.load %arg1[%c1, %c0_4] : memref<2x256xf32, #tpu.memory_space<vmem>>, vector<1x256xf32>
    %c1_i32 = arith.constant 1 : i32
    %4 = tpu.dynamic_rotate %1 by %c1_i32 dim 1 : vector<8x256xf32>, i32 -> vector<8x256xf32>
    %c255_i32 = arith.constant 255 : i32
    %5 = tpu.dynamic_rotate %1 by %c255_i32 dim 1 : vector<8x256xf32>, i32 -> vector<8x256xf32>
    %6 = arith.addf %1, %4 : vector<8x256xf32>
    %7 = arith.addf %6, %5 : vector<8x256xf32>
    %8 = arith.subf %5, %4 : vector<8x256xf32>
    %9 = vector.broadcast %2 : vector<1x256xf32> to vector<8x256xf32>
    %10 = arith.mulf %9, %8 : vector<8x256xf32>
    %11 = arith.addf %7, %10 : vector<8x256xf32>
    %c16_i32 = arith.constant 16 : i32
    %12 = tpu.dynamic_rotate %11 by %c16_i32 dim 1 : vector<8x256xf32>, i32 -> vector<8x256xf32>
    %c240_i32 = arith.constant 240 : i32
    %13 = tpu.dynamic_rotate %11 by %c240_i32 dim 1 : vector<8x256xf32>, i32 -> vector<8x256xf32>
    %14 = arith.addf %11, %12 : vector<8x256xf32>
    %15 = arith.addf %14, %13 : vector<8x256xf32>
    %16 = arith.subf %13, %12 : vector<8x256xf32>
    %17 = vector.broadcast %3 : vector<1x256xf32> to vector<8x256xf32>
    %18 = arith.mulf %17, %16 : vector<8x256xf32>
    %19 = arith.addf %15, %18 : vector<8x256xf32>
    %cst = arith.constant 9.000000e+00 : f32
    %20 = vector.broadcast %cst : f32 to vector<8x256xf32>
    %21 = arith.mulf %20, %1 : vector<8x256xf32>
    %22 = arith.subf %19, %21 : vector<8x256xf32>
    %23 = math.absf %22 : vector<8x256xf32>
    %cst_5 = arith.constant 2.500000e-01 : f32
    %24 = vector.broadcast %cst_5 : f32 to vector<8x256xf32>
    %25 = arith.mulf %24, %23 : vector<8x256xf32>
    %26 = vector.extract_strided_slice %25 {offsets = [3, 0], sizes = [1, 256], strides = [1, 1]} : vector<8x256xf32> to vector<1x256xf32>
    %c0_6 = arith.constant 0 : index
    %c0_7 = arith.constant 0 : index
    %c0_8 = arith.constant 0 : index
    %27 = vector.load %arg3[%c0_6, %c0_7, %c0_8] : memref<1x8x256xf32, #tpu.memory_space<vmem>>, vector<1x1x256xf32>
    %28 = vector.shape_cast %27 : vector<1x1x256xf32> to vector<1x256xf32>
    %29 = vector.shape_cast %26 : vector<1x256xf32> to vector<1x1x256xf32>
    tpu.vector_store %arg3[%c0_6, %c0_7, %c0_8], %29 {strides = array<i32>} : memref<1x8x256xf32, #tpu.memory_space<vmem>>, vector<1x1x256xf32>,
    %30 = vector.extract_strided_slice %25 {offsets = [2, 0], sizes = [1, 256], strides = [1, 1]} : vector<8x256xf32> to vector<1x256xf32>
    %c0_9 = arith.constant 0 : index
    %c1_10 = arith.constant 1 : index
    %c0_11 = arith.constant 0 : index
    %31 = vector.load %arg3[%c0_9, %c1_10, %c0_11] : memref<1x8x256xf32, #tpu.memory_space<vmem>>, vector<1x1x256xf32>
    %32 = vector.shape_cast %31 : vector<1x1x256xf32> to vector<1x256xf32>
    %33 = vector.shape_cast %30 : vector<1x256xf32> to vector<1x1x256xf32>
    tpu.vector_store %arg3[%c0_9, %c1_10, %c0_11], %33 {strides = array<i32>} : memref<1x8x256xf32, #tpu.memory_space<vmem>>, vector<1x1x256xf32>,
    %34 = vector.extract_strided_slice %25 {offsets = [1, 0], sizes = [1, 256], strides = [1, 1]} : vector<8x256xf32> to vector<1x256xf32>
    %c0_12 = arith.constant 0 : index
    %c2 = arith.constant 2 : index
    %c0_13 = arith.constant 0 : index
    %35 = vector.load %arg3[%c0_12, %c2, %c0_13] : memref<1x8x256xf32, #tpu.memory_space<vmem>>, vector<1x1x256xf32>
    %36 = vector.shape_cast %35 : vector<1x1x256xf32> to vector<1x256xf32>
    %37 = vector.shape_cast %34 : vector<1x256xf32> to vector<1x1x256xf32>
    tpu.vector_store %arg3[%c0_12, %c2, %c0_13], %37 {strides = array<i32>} : memref<1x8x256xf32, #tpu.memory_space<vmem>>, vector<1x1x256xf32>,
    %38 = vector.extract_strided_slice %25 {offsets = [0, 0], sizes = [1, 256], strides = [1, 1]} : vector<8x256xf32> to vector<1x256xf32>
    %c0_14 = arith.constant 0 : index
    %c3 = arith.constant 3 : index
    %c0_15 = arith.constant 0 : index
    %39 = vector.load %arg3[%c0_14, %c3, %c0_15] : memref<1x8x256xf32, #tpu.memory_space<vmem>>, vector<1x1x256xf32>
    %40 = vector.shape_cast %39 : vector<1x1x256xf32> to vector<1x256xf32>
    %41 = vector.shape_cast %38 : vector<1x256xf32> to vector<1x1x256xf32>
    tpu.vector_store %arg3[%c0_14, %c3, %c0_15], %41 {strides = array<i32>} : memref<1x8x256xf32, #tpu.memory_space<vmem>>, vector<1x1x256xf32>,
    %42 = vector.extract_strided_slice %25 {offsets = [7, 0], sizes = [1, 256], strides = [1, 1]} : vector<8x256xf32> to vector<1x256xf32>
    %c0_16 = arith.constant 0 : index
    %c4 = arith.constant 4 : index
    %c0_17 = arith.constant 0 : index
    %43 = vector.load %arg3[%c0_16, %c4, %c0_17] : memref<1x8x256xf32, #tpu.memory_space<vmem>>, vector<1x1x256xf32>
    %44 = vector.shape_cast %43 : vector<1x1x256xf32> to vector<1x256xf32>
    %45 = vector.shape_cast %42 : vector<1x256xf32> to vector<1x1x256xf32>
    tpu.vector_store %arg3[%c0_16, %c4, %c0_17], %45 {strides = array<i32>} : memref<1x8x256xf32, #tpu.memory_space<vmem>>, vector<1x1x256xf32>,
    %46 = vector.extract_strided_slice %25 {offsets = [6, 0], sizes = [1, 256], strides = [1, 1]} : vector<8x256xf32> to vector<1x256xf32>
    %c0_18 = arith.constant 0 : index
    %c5 = arith.constant 5 : index
    %c0_19 = arith.constant 0 : index
    %47 = vector.load %arg3[%c0_18, %c5, %c0_19] : memref<1x8x256xf32, #tpu.memory_space<vmem>>, vector<1x1x256xf32>
    %48 = vector.shape_cast %47 : vector<1x1x256xf32> to vector<1x256xf32>
    %49 = vector.shape_cast %46 : vector<1x256xf32> to vector<1x1x256xf32>
    tpu.vector_store %arg3[%c0_18, %c5, %c0_19], %49 {strides = array<i32>} : memref<1x8x256xf32, #tpu.memory_space<vmem>>, vector<1x1x256xf32>,
    %50 = vector.extract_strided_slice %25 {offsets = [5, 0], sizes = [1, 256], strides = [1, 1]} : vector<8x256xf32> to vector<1x256xf32>
    %c0_20 = arith.constant 0 : index
    %c6 = arith.constant 6 : index
    %c0_21 = arith.constant 0 : index
    %51 = vector.load %arg3[%c0_20, %c6, %c0_21] : memref<1x8x256xf32, #tpu.memory_space<vmem>>, vector<1x1x256xf32>
    %52 = vector.shape_cast %51 : vector<1x1x256xf32> to vector<1x256xf32>
    %53 = vector.shape_cast %50 : vector<1x256xf32> to vector<1x1x256xf32>
    tpu.vector_store %arg3[%c0_20, %c6, %c0_21], %53 {strides = array<i32>} : memref<1x8x256xf32, #tpu.memory_space<vmem>>, vector<1x1x256xf32>,
    %54 = vector.extract_strided_slice %25 {offsets = [4, 0], sizes = [1, 256], strides = [1, 1]} : vector<8x256xf32> to vector<1x256xf32>
    %c0_22 = arith.constant 0 : index
    %c7 = arith.constant 7 : index
    %c0_23 = arith.constant 0 : index
    %55 = vector.load %arg3[%c0_22, %c7, %c0_23] : memref<1x8x256xf32, #tpu.memory_space<vmem>>, vector<1x1x256xf32>
    %56 = vector.shape_cast %55 : vector<1x1x256xf32> to vector<1x256xf32>
    %57 = vector.shape_cast %54 : vector<1x256xf32> to vector<1x1x256xf32>
    tpu.vector_store %arg3[%c0_22, %c7, %c0_23], %57 {strides = array<i32>} : memref<1x8x256xf32, #tpu.memory_space<vmem>>, vector<1x1x256xf32>,
    return
  }
  func.func @transform_0(%arg0: i32) -> (i32, i32) {
    %c0_i32 = arith.constant 0 : i32
    %c0_i32_0 = arith.constant 0 : i32
    %c0_i32_1 = arith.constant 0 : i32
    return %c0_i32, %c0_i32_0 : i32, i32
  }
  func.func @transform_1(%arg0: i32) -> (i32, i32, i32) {
    %c0_i32 = arith.constant 0 : i32
    %c0_i32_0 = arith.constant 0 : i32
    %c0_i32_1 = arith.constant 0 : i32
    return %arg0, %c0_i32, %c0_i32_0 : i32, i32, i32
  }
  func.func @transform_2(%arg0: i32) -> (i32, i32, i32) {
    %c0_i32 = arith.constant 0 : i32
    %c0_i32_0 = arith.constant 0 : i32
    %c0_i32_1 = arith.constant 0 : i32
    return %arg0, %c0_i32, %c0_i32_0 : i32, i32, i32
  }
}

</mosaic_0001>

<llo_original>
// kernel: tpu_custom_call.1
$region0: #{tpu_custom_call.1}
  #allocation0 [shape = 'u32[]', space=smem, size = 0x4, offset = 0x4, fixed_abs, tag = 'smem constant byte address 0x4 - core index']
  #allocation1 [shape = 'u32[144,128]{1,0:T(1,128)}', space=vmem, size = 0x12000, scoped, tag = 'internal scratch']
  %s0 = inlined_call_operand.hbm [shape: f32[2,256], index: 0, kind: input, shape index: {}]
  %s1 = inlined_call_operand.hbm [shape: f32[1,8,256], index: 1, kind: input, shape index: {}]
  %s2 = inlined_call_operand.hbm [shape: f32[1,8,256], index: 2, kind: output, shape index: {}]
  %s3 = sld [smem:[#allocation0]]
  $region26: #{tpu_custom_call.1} parent=0
    _
  %s5 = ssub.s32 1, %s3
  %s6 = scalar_select 0, %s5, %s3
  $region1: #{tpu_custom_call.1} parent=0
    #allocation2 [shape = 'u8[2048]{0}', space=vmem, size = 0x800, scoped, tag = 'input window, operand 0, single buffered']
    #allocation3 [shape = 's32[1]{0}', space=sflag, size = 0x4, scoped, tag = 'scoped memory for tpu_custom_call.1']
    #allocation4 [shape = 's32[1]{0}', space=sflag, size = 0x4, scoped, tag = 'scoped memory for tpu_custom_call.1']
    #allocation5 [shape = 'u8[8192]{0}', space=vmem, size = 0x2000, scoped, tag = 'input window, operand 1, single buffered']
    #allocation6 [shape = 's32[1]{0}', space=sflag, size = 0x4, scoped, tag = 'scoped memory for tpu_custom_call.1']
    #allocation7 [shape = 'u8[8192]{0}', space=vmem, size = 0x2000, scoped, tag = 'output window, operand 0, single buffered']
    %7 = vsyncpa [#allocation3], 0
    %8 = vsyncpa [#allocation6], 0
    %9 = vsyncpa [#allocation4], 0
    // Predicated region
    $region2: #{tpu_custom_call.1} parent=1 // pred_check
      _
    $region3: #{tpu_custom_call.1} parent=1 // pred_check_branch
      %11 = sbr.rel (0) target = $region5
    $region4: #{tpu_custom_call.1} parent=1 // pred_region
      %s13 = ssub.s32 64, 64
      %14 = vsyncadd [#allocation3], %s13
      %s16 = sshll.u32 [#allocation2], 4
      %s17 = int_to_ptr.vmem [resolvable:$true] %s16
      %19 = dma.hbm_to_vmem [thread:$0]  %s0, 64, %s17, [#allocation3]
    $region5: #{tpu_custom_call.1} parent=1 // pred_fallthru
      _
    // Predicated region
    $region6: #{tpu_custom_call.1} parent=1 // pred_check
      _
    $region7: #{tpu_custom_call.1} parent=1 // pred_check_branch
      %21 = sbr.rel (0) target = $region9
    $region8: #{tpu_custom_call.1} parent=1 // pred_region
      %s23 = ssub.s32 256, 256
      %24 = vsyncadd [#allocation6], %s23
      %s26 = sshll.u32 [#allocation5], 4
      %s27 = int_to_ptr.vmem [resolvable:$true] %s26
      %29 = dma.hbm_to_vmem [thread:$0]  %s1, 256, %s27, [#allocation6]
    $region9: #{tpu_custom_call.1} parent=1 // pred_fallthru
      _
    // Predicated region
    $region10: #{tpu_custom_call.1} parent=1 // pred_check
      _
    $region11: #{tpu_custom_call.1} parent=1 // pred_check_branch
      %31 = sbr.rel (0) target = $region13
    $region12: #{tpu_custom_call.1} parent=1 // pred_region
      %32 = dma.done [#allocation3], 64
    $region13: #{tpu_custom_call.1} parent=1 // pred_fallthru
      _
    // Predicated region
    $region14: #{tpu_custom_call.1} parent=1 // pred_check
      _
    $region15: #{tpu_custom_call.1} parent=1 // pred_check_branch
      %34 = sbr.rel (0) target = $region17
    $region16: #{tpu_custom_call.1} parent=1 // pred_region
      %35 = dma.done [#allocation6], 256
    $region17: #{tpu_custom_call.1} parent=1 // pred_fallthru
      _
    %v36 = vld [vmem:[#allocation5] sm:$0xff]
    %v37 = vld [vmem:[#allocation5 + $0x8] sm:$0xff]
    %v38 = vld [vmem:[#allocation2] ss:$2 sm:$0x3]
    %s39 = scalar_lea.vmem [#allocation2], 1
    %v40 = vld [vmem:[%s39] ss:$2 sm:$0x3]
    %41 = vrot.lane.b32.xlu0 %v36, 1
    %v42 = vpop.permute.xlu0 %41
    %43 = vrot.lane.b32.xlu0 %v37, 1
    %v44 = vpop.permute.xlu0 %43
    %v45 = vlaneseq
    %v46 = vand.u32 %v45, 127
    %vm47 = vcmp.lt.s32.totalorder %v46, 1
    %v48 = vsel %vm47, %v42, %v44
    %v49 = vsel %vm47, %v44, %v42
    %50 = vrot.lane.b32.xlu0 %v36, 127
    %v51 = vpop.permute.xlu0 %50
    %52 = vrot.lane.b32.xlu0 %v37, 127
    %v53 = vpop.permute.xlu0 %52
    %vm54 = vcmp.lt.s32.totalorder %v46, 127
    %v55 = vsel %vm54, %v51, %v53
    %v56 = vsel %vm54, %v53, %v51
    %v57 = vadd.f32 %v36, %v49
    %v58 = vadd.f32 %v37, %v48
    %v59 = vadd.f32 %v57, %v55
    %v60 = vadd.f32 %v58, %v56
    %v61 = vsub.f32 %v55, %v49
    %v62 = vsub.f32 %v56, %v48
    %v64 = vlaneseq
    %v65 = vshrl.u32 %v64, 7
    %v66 = vsub.s32 0, %v65
    %v67 = vrot.slane %v38, %v66
    %v68 = vlaneseq
    %v69 = vshrl.u32 %v68, 7
    %v70 = vsub.s32 1, %v69
    %v71 = vrot.slane %v38, %v70
    %v74 = vmul.f32 %v67, %v61
    %v75 = vmul.f32 %v71, %v62
    %v76 = vadd.f32 %v59, %v74
    %v77 = vadd.f32 %v60, %v75
    %78 = vrot.lane.b32.xlu0 %v76, 16
    %v79 = vpop.permute.xlu0 %78
    %80 = vrot.lane.b32.xlu0 %v77, 16
    %v81 = vpop.permute.xlu0 %80
    %vm82 = vcmp.lt.s32.totalorder %v46, 16
    %v83 = vsel %vm82, %v79, %v81
    %v84 = vsel %vm82, %v81, %v79
    %85 = vrot.lane.b32.xlu0 %v76, 112
    %v86 = vpop.permute.xlu0 %85
    %87 = vrot.lane.b32.xlu0 %v77, 112
    %v88 = vpop.permute.xlu0 %87
    %vm89 = vcmp.lt.s32.totalorder %v46, 112
    %v90 = vsel %vm89, %v86, %v88
    %v91 = vsel %vm89, %v88, %v86
    %v92 = vadd.f32 %v76, %v84
    %v93 = vadd.f32 %v77, %v83
    %v94 = vadd.f32 %v92, %v90
    %v95 = vadd.f32 %v93, %v91
    %v96 = vsub.f32 %v90, %v84
    %v97 = vsub.f32 %v91, %v83
    %v99 = vlaneseq
    %v100 = vshrl.u32 %v99, 7
    %v101 = vsub.s32 0, %v100
    %v102 = vrot.slane %v40, %v101
    %v103 = vlaneseq
    %v104 = vshrl.u32 %v103, 7
    %v105 = vsub.s32 1, %v104
    %v106 = vrot.slane %v40, %v105
    %v109 = vmul.f32 %v102, %v96
    %v110 = vmul.f32 %v106, %v97
    %v111 = vadd.f32 %v94, %v109
    %v112 = vadd.f32 %v95, %v110
    %v113 = vmul.f32 %v36, 9.0
    %v114 = vmul.f32 %v37, 9.0
    %v115 = vsub.f32 %v111, %v113
    %v116 = vsub.f32 %v112, %v114
    %v117 = vand.u32 2147483647, %v115
    %v118 = vand.u32 2147483647, %v116
    %v119 = vmul.f32 %v117, 0.25
    %v120 = vmul.f32 %v118, 0.25
    %v123 = vrot.slane %v119, 3
    %v124 = vrot.slane %v120, 3
    %v127 = vrot.slane %v119, 1
    %v128 = vrot.slane %v120, 1
    %v131 = vrot.slane %v119, 7
    %v132 = vrot.slane %v120, 7
    %v135 = vrot.slane %v119, 5
    %v136 = vrot.slane %v120, 5
    %vm139 = vcmask 1040384
    %v140 = vsel %vm139, %v123, %v127
    %v141 = vsel %vm139, %v124, %v128
    %vm142 = vcmask 1041408
    %v143 = vsel %vm142, %v140, %v131
    %v144 = vsel %vm142, %v141, %v132
    %vm145 = vcmask 1042432
    %v146 = vsel %vm145, %v143, %v135
    %v147 = vsel %vm145, %v144, %v136
    %vm148 = vcmask 1043456
    %v149 = vsel %vm148, %v146, %v123
    %v150 = vsel %vm148, %v147, %v124
    %vm151 = vcmask 1044480
    %v152 = vsel %vm151, %v149, %v127
    %v153 = vsel %vm151, %v150, %v128
    %vm154 = vcmask 1045504
    %v155 = vsel %vm154, %v152, %v131
    %v156 = vsel %vm154, %v153, %v132
    %vm157 = vcmask 1046528
    %v158 = vsel %vm157, %v155, %v135
    %v159 = vsel %vm157, %v156, %v136
    %160 = vst [vmem:[#allocation7] sm:$0xff] %v158
    %161 = vst [vmem:[#allocation7 + $0x8] sm:$0xff] %v159
    // Predicated region
    $region18: #{tpu_custom_call.1} parent=1 // pred_check
      _
    $region19: #{tpu_custom_call.1} parent=1 // pred_check_branch
      %163 = sbr.rel (0) target = $region21
    $region20: #{tpu_custom_call.1} parent=1 // pred_region
      %s165 = ssub.s32 256, 256
      %166 = vsyncadd [#allocation4], %s165
      %s168 = sshll.u32 [#allocation7], 4
      %s169 = int_to_ptr.vmem [resolvable:$true] %s168
      %171 = dma.vmem_to_hbm [thread:$0]  %s169, 256, %s2, [#allocation4]
    $region21: #{tpu_custom_call.1} parent=1 // pred_fallthru
      _
    // Predicated region
    $region22: #{tpu_custom_call.1} parent=1 // pred_check
      _
    $region23: #{tpu_custom_call.1} parent=1 // pred_check_branch
      %173 = sbr.rel (0) target = $region25
    $region24: #{tpu_custom_call.1} parent=1 // pred_region
      %174 = dma.done [#allocation4], 256
    $region25: #{tpu_custom_call.1} parent=1 // pred_fallthru
      _
    %175 = vsyncpa [#allocation3], 1
    %176 = vsyncpa [#allocation6], 1
    %177 = vsyncpa [#allocation4], 1

// kernel: tpu_custom_call.1
$region0: #{tpu_custom_call.1}
  #allocation0 [shape = 'u32[]', space=smem, size = 0x4, offset = 0x4, fixed_abs, tag = 'smem constant byte address 0x4 - core index']
  #allocation1 [shape = 'u32[144,128]{1,0:T(1,128)}', space=vmem, size = 0x12000, scoped, tag = 'internal scratch']
  %s0 = inlined_call_operand.hbm [shape: f32[2,256], index: 0, kind: input, shape index: {}]
  %s1 = inlined_call_operand.hbm [shape: f32[1,8,256], index: 1, kind: input, shape index: {}]
  %s2 = inlined_call_operand.hbm [shape: f32[1,8,256], index: 2, kind: output, shape index: {}]
  %s3 = sld [smem:[#allocation0]]
  $region26: #{tpu_custom_call.1} parent=0
    _
  %s5 = ssub.s32 1, %s3
  %s6 = scalar_select 0, %s5, %s3
  $region1: #{tpu_custom_call.1} parent=0
    #allocation2 [shape = 'u8[2048]{0}', space=vmem, size = 0x800, scoped, tag = 'input window, operand 0, single buffered']
    #allocation3 [shape = 's32[1]{0}', space=sflag, size = 0x4, scoped, tag = 'scoped memory for tpu_custom_call.1']
    #allocation4 [shape = 's32[1]{0}', space=sflag, size = 0x4, scoped, tag = 'scoped memory for tpu_custom_call.1']
    #allocation5 [shape = 'u8[8192]{0}', space=vmem, size = 0x2000, scoped, tag = 'input window, operand 1, single buffered']
    #allocation6 [shape = 's32[1]{0}', space=sflag, size = 0x4, scoped, tag = 'scoped memory for tpu_custom_call.1']
    #allocation7 [shape = 'u8[8192]{0}', space=vmem, size = 0x2000, scoped, tag = 'output window, operand 0, single buffered']
    %7 = vsyncpa [#allocation3], 0
    %8 = vsyncpa [#allocation6], 0
    %9 = vsyncpa [#allocation4], 0
    // Predicated region
    $region2: #{tpu_custom_call.1} parent=1 // pred_check
      _
    $region3: #{tpu_custom_call.1} parent=1 // pred_check_branch
      %11 = sbr.rel (0) target = $region5
    $region4: #{tpu_custom_call.1} parent=1 // pred_region
      %s13 = ssub.s32 64, 64
      %14 = vsyncadd [#allocation3], %s13
      %s16 = sshll.u32 [#allocation2], 4
      %s17 = int_to_ptr.vmem [resolvable:$true] %s16
      %19 = dma.hbm_to_vmem [thread:$0]  %s0, 64, %s17, [#allocation3]
    $region5: #{tpu_custom_call.1} parent=1 // pred_fallthru
      _
    // Predicated region
    $region6: #{tpu_custom_call.1} parent=1 // pred_check
      _
    $region7: #{tpu_custom_call.1} parent=1 // pred_check_branch
      %21 = sbr.rel (0) target = $region9
    $region8: #{tpu_custom_call.1} parent=1 // pred_region
      %s23 = ssub.s32 256, 256
      %24 = vsyncadd [#allocation6], %s23
      %s26 = sshll.u32 [#allocation5], 4
      %s27 = int_to_ptr.vmem [resolvable:$true] %s26
      %29 = dma.hbm_to_vmem [thread:$0]  %s1, 256, %s27, [#allocation6]
    $region9: #{tpu_custom_call.1} parent=1 // pred_fallthru
      _
    // Predicated region
    $region10: #{tpu_custom_call.1} parent=1 // pred_check
      _
    $region11: #{tpu_custom_call.1} parent=1 // pred_check_branch
      %31 = sbr.rel (0) target = $region13
    $region12: #{tpu_custom_call.1} parent=1 // pred_region
      %32 = dma.done [#allocation3], 64
    $region13: #{tpu_custom_call.1} parent=1 // pred_fallthru
      _
    // Predicated region
    $region14: #{tpu_custom_call.1} parent=1 // pred_check
      _
    $region15: #{tpu_custom_call.1} parent=1 // pred_check_branch
      %34 = sbr.rel (0) target = $region17
    $region16: #{tpu_custom_call.1} parent=1 // pred_region
      %35 = dma.done [#allocation6], 256
    $region17: #{tpu_custom_call.1} parent=1 // pred_fallthru
      _
    %v36 = vld [vmem:[#allocation5] sm:$0xff]
    %v37 = vld [vmem:[#allocation5 + $0x8] sm:$0xff]
    %v38 = vld [vmem:[#allocation2] ss:$2 sm:$0x3]
    %s39 = scalar_lea.vmem [#allocation2], 1
    %v40 = vld [vmem:[%s39] ss:$2 sm:$0x3]
    %41 = vrot.lane.b32.xlu0 %v36, 1
    %v42 = vpop.permute.xlu0 %41
    %43 = vrot.lane.b32.xlu0 %v37, 1
    %v44 = vpop.permute.xlu0 %43
    %v45 = vlaneseq
    %v46 = vand.u32 %v45, 127
    %vm47 = vcmp.lt.s32.totalorder %v46, 1
    %v48 = vsel %vm47, %v42, %v44
    %v49 = vsel %vm47, %v44, %v42
    %50 = vrot.lane.b32.xlu0 %v36, 127
    %v51 = vpop.permute.xlu0 %50
    %52 = vrot.lane.b32.xlu0 %v37, 127
    %v53 = vpop.permute.xlu0 %52
    %vm54 = vcmp.lt.s32.totalorder %v46, 127
    %v55 = vsel %vm54, %v51, %v53
    %v56 = vsel %vm54, %v53, %v51
    %v57 = vadd.f32 %v36, %v49
    %v58 = vadd.f32 %v37, %v48
    %v59 = vadd.f32 %v57, %v55
    %v60 = vadd.f32 %v58, %v56
    %v61 = vsub.f32 %v55, %v49
    %v62 = vsub.f32 %v56, %v48
    %v64 = vlaneseq
    %v65 = vshrl.u32 %v64, 7
    %v66 = vsub.s32 0, %v65
    %v67 = vrot.slane %v38, %v66
    %v68 = vlaneseq
    %v69 = vshrl.u32 %v68, 7
    %v70 = vsub.s32 1, %v69
    %v71 = vrot.slane %v38, %v70
    %v74 = vmul.f32 %v67, %v61
    %v75 = vmul.f32 %v71, %v62
    %v76 = vadd.f32 %v59, %v74
    %v77 = vadd.f32 %v60, %v75
    %78 = vrot.lane.b32.xlu0 %v76, 16
    %v79 = vpop.permute.xlu0 %78
    %80 = vrot.lane.b32.xlu0 %v77, 16
    %v81 = vpop.permute.xlu0 %80
    %vm82 = vcmp.lt.s32.totalorder %v46, 16
    %v83 = vsel %vm82, %v79, %v81
    %v84 = vsel %vm82, %v81, %v79
    %85 = vrot.lane.b32.xlu0 %v76, 112
    %v86 = vpop.permute.xlu0 %85
    %87 = vrot.lane.b32.xlu0 %v77, 112
    %v88 = vpop.permute.xlu0 %87
    %vm89 = vcmp.lt.s32.totalorder %v46, 112
    %v90 = vsel %vm89, %v86, %v88
    %v91 = vsel %vm89, %v88, %v86
    %v92 = vadd.f32 %v76, %v84
    %v93 = vadd.f32 %v77, %v83
    %v94 = vadd.f32 %v92, %v90
    %v95 = vadd.f32 %v93, %v91
    %v96 = vsub.f32 %v90, %v84
    %v97 = vsub.f32 %v91, %v83
    %v99 = vlaneseq
    %v100 = vshrl.u32 %v99, 7
    %v101 = vsub.s32 0, %v100
    %v102 = vrot.slane %v40, %v101
    %v103 = vlaneseq
    %v104 = vshrl.u32 %v103, 7
    %v105 = vsub.s32 1, %v104
    %v106 = vrot.slane %v40, %v105
    %v109 = vmul.f32 %v102, %v96
    %v110 = vmul.f32 %v106, %v97
    %v111 = vadd.f32 %v94, %v109
    %v112 = vadd.f32 %v95, %v110
    %v113 = vmul.f32 %v36, 9.0
    %v114 = vmul.f32 %v37, 9.0
    %v115 = vsub.f32 %v111, %v113
    %v116 = vsub.f32 %v112, %v114
    %v117 = vand.u32 2147483647, %v115
    %v118 = vand.u32 2147483647, %v116
    %v119 = vmul.f32 %v117, 0.25
    %v120 = vmul.f32 %v118, 0.25
    %v123 = vcombine.low %v119, %v120
    %v125 = vunpack.c.l.s4 1966171168
    %v126 = vunpack.c.0.s8 %v125
    %v127 = vlaneseq
    %v128 = vshrl.u32 %v127, 7
    %v129 = vsub.s32 %v126, %v128
    %v130 = vrot.slane %v123, %v129
    %v131 = vcombine.high %v130, %v130
    %v133 = vunpack.c.l.s4 1966171168
    %v134 = vunpack.c.0.s8 %v133
    %v135 = vlaneseq
    %v136 = vshrl.u32 %v135, 7
    %v137 = vsub.s32 %v134, %v136
    %v138 = vrot.slane %v131, %v137
    %v139 = vcombine.high %v138, %v138
    %v141 = vlaneseq
    %vm142 = vcmp.ge.s32.totalorder %v141, 0
    %vm143 = vcmp.lt.s32.totalorder %v141, 256
    %vm144 = vmand %vm142, %vm143
    %145 = vst.msk [vmem:[#allocation7] ss:$8 sm:$0x3] %vm144, %v139
    %146 = vst.msk [vmem:[#allocation7] ss:$8 sm:$0x0] %vm144, %v139
    %v148 = vunpack.c.l.s4 1966171168
    %v149 = vunpack.c.0.s8 %v148
    %v150 = vlaneseq
    %v151 = vshrl.u32 %v150, 7
    %v152 = vsub.s32 %v149, %v151
    %v153 = vrot.slane %v130, %v152
    %v154 = vcombine.high %v153, %v153
    %s156 = scalar_lea.vmem [#allocation7], 1
    %157 = vst.msk [vmem:[%s156] ss:$8 sm:$0x3] %vm144, %v154
    %158 = vst.msk [vmem:[%s156] ss:$8 sm:$0x0] %vm144, %v154
    %s160 = scalar_lea.vmem [#allocation7], 2
    %161 = vst.msk [vmem:[%s160] ss:$8 sm:$0x3] %vm144, %v138
    %162 = vst.msk [vmem:[%s160] ss:$8 sm:$0x0] %vm144, %v138
    %s164 = scalar_lea.vmem [#allocation7], 3
    %165 = vst.msk [vmem:[%s164] ss:$8 sm:$0x3] %vm144, %v153
    %166 = vst.msk [vmem:[%s164] ss:$8 sm:$0x0] %vm144, %v153
    %v167 = vcombine.high %v119, %v120
    %v169 = vunpack.c.l.s4 1966171168
    %v170 = vunpack.c.0.s8 %v169
    %v171 = vlaneseq
    %v172 = vshrl.u32 %v171, 7
    %v173 = vsub.s32 %v170, %v172
    %v174 = vrot.slane %v167, %v173
    %v175 = vcombine.high %v174, %v174
    %v177 = vunpack.c.l.s4 1966171168
    %v178 = vunpack.c.0.s8 %v177
    %v179 = vlaneseq
    %v180 = vshrl.u32 %v179, 7
    %v181 = vsub.s32 %v178, %v180
    %v182 = vrot.slane %v175, %v181
    %v183 = vcombine.high %v182, %v182
    %s185 = scalar_lea.vmem [#allocation7], 4
    %186 = vst.msk [vmem:[%s185] ss:$8 sm:$0x3] %vm144, %v183
    %187 = vst.msk [vmem:[%s185] ss:$8 sm:$0x0] %vm144, %v183
    %v189 = vunpack.c.l.s4 1966171168
    %v190 = vunpack.c.0.s8 %v189
    %v191 = vlaneseq
    %v192 = vshrl.u32 %v191, 7
    %v193 = vsub.s32 %v190, %v192
    %v194 = vrot.slane %v174, %v193
    %v195 = vcombine.high %v194, %v194
    %s197 = scalar_lea.vmem [#allocation7], 5
    %198 = vst.msk [vmem:[%s197] ss:$8 sm:$0x3] %vm144, %v195
    %199 = vst.msk [vmem:[%s197] ss:$8 sm:$0x0] %vm144, %v195
    %s201 = scalar_lea.vmem [#allocation7], 6
    %202 = vst.msk [vmem:[%s201] ss:$8 sm:$0x3] %vm144, %v182
    %203 = vst.msk [vmem:[%s201] ss:$8 sm:$0x0] %vm144, %v182
    %s205 = scalar_lea.vmem [#allocation7], 7
    %206 = vst.msk [vmem:[%s205] ss:$8 sm:$0x3] %vm144, %v194
    %207 = vst.msk [vmem:[%s205] ss:$8 sm:$0x0] %vm144, %v194
    // Predicated region
    $region18: #{tpu_custom_call.1} parent=1 // pred_check
      _
    $region19: #{tpu_custom_call.1} parent=1 // pred_check_branch
      %209 = sbr.rel (0) target = $region21
    $region20: #{tpu_custom_call.1} parent=1 // pred_region
      %s211 = ssub.s32 256, 256
      %212 = vsyncadd [#allocation4], %s211
      %s214 = sshll.u32 [#allocation7], 4
      %s215 = int_to_ptr.vmem [resolvable:$true] %s214
      %217 = dma.vmem_to_hbm [thread:$0]  %s215, 256, %s2, [#allocation4]
    $region21: #{tpu_custom_call.1} parent=1 // pred_fallthru
      _
    // Predicated region
    $region22: #{tpu_custom_call.1} parent=1 // pred_check
      _
    $region23: #{tpu_custom_call.1} parent=1 // pred_check_branch
      %219 = sbr.rel (0) target = $region25
    $region24: #{tpu_custom_call.1} parent=1 // pred_region
      %220 = dma.done [#allocation4], 256
    $region25: #{tpu_custom_call.1} parent=1 // pred_fallthru
      _
    %221 = vsyncpa [#allocation3], 1
    %222 = vsyncpa [#allocation6], 1
    %223 = vsyncpa [#allocation4], 1

</llo_original>
